<compile_context>
chip_gen: v5e
topology: v5e:2x2
jax: 0.10.0
libtpu: 0.0.40
codegen_flags: <defaults>
</compile_context>

<pallas_src>
import functools
import math

import jax
import jax.numpy as jnp
from jax.experimental import pallas as pl
from jax.experimental.pallas import tpu as pltpu


def _largest_divisor_leq(n, cap):
    for d in range(min(n, cap), 0, -1):
        if n % d == 0:
            return d
    return 1


def _mha_kernel(q_ref, k_ref, v_ref, wfc_ref, o_ref, *, n_heads, d_k):
    """One batch-block per grid step.

    q_ref/k_ref/v_ref: (B_blk, S, H*d_k) bf16 VMEM blocks (lane-dense, scale folded
                       into Q upstream).
    wfc_ref:           (H*d_k, d_model) bf16 VMEM block (fc weight, transposed).
    o_ref:             (B_blk, S, d_model) f32 VMEM block (lane-dense store).
    """
    b_blk, seq, chans = q_ref.shape
    d_model = o_ref.shape[-1]
    assert chans == n_heads * d_k

    ctx_heads = []
    for h in range(n_heads):  # static unroll; n_heads is small
        lo = h * d_k
        q = q_ref[:, :, lo:lo + d_k]          # (B_blk, S, d_k) bf16
        k = k_ref[:, :, lo:lo + d_k]          # (B_blk, S, d_k) bf16
        v = v_ref[:, :, lo:lo + d_k]          # (B_blk, S, d_k) bf16

        # scores = Q @ K^T per batch element: contract last dims, batch over the
        # block dim -- no physical K transpose, f32 accumulation.
        s = jnp.einsum('bqc,bkc->bqk', q, k,
                       preferred_element_type=jnp.float32)        # (B_blk, S, S)

        # Numerically stable softmax along the last axis (all f32 elementwise).
        m = jnp.max(s, axis=-1, keepdims=True)
        p = jnp.exp(s - m)
        denom = jnp.sum(p, axis=-1, keepdims=True)
        attn = (p * pl.reciprocal(denom, approx=True)).astype(v.dtype)  # EUP recip

        ctx = jnp.einsum('bqk,bkc->bqc', attn, v,
                         preferred_element_type=jnp.float32)       # (B_blk, S, d_k)
        ctx_heads.append(ctx.astype(wfc_ref.dtype))

    # One fused fc matmul over the concatenated head contexts: the batch block is
    # stacked on the MXU M dimension -> (B_blk*S, H*d_k) @ (H*d_k, d_model).
    ctx_cat = jnp.concatenate(ctx_heads, axis=-1)                  # (B_blk, S, H*d_k)
    out = jnp.dot(ctx_cat.reshape(b_blk * seq, chans), wfc_ref[...],
                  preferred_element_type=jnp.float32)              # (B_blk*S, d_model)
    o_ref[...] = out.reshape(b_blk, seq, d_model).astype(o_ref.dtype)


def _mha_attention_fc(Qp, Kp, Vp, w_fc, *, n_heads, d_k, batch_block=8):
    """Pallas call: multi-head attention fused with the output projection.

    Qp, Kp, Vp: [B, S, H*d_k] projected tensors in the module's (view-quirk) head
                layout, lane-dense.  w_fc: [d_model, H*d_k] (torch Linear, no bias).
    Returns: [B, S, d_model] float32.
    """
    B, S, C = Qp.shape
    d_model = w_fc.shape[0]
    assert w_fc.shape[1] == C == n_heads * d_k

    b_blk = _largest_divisor_leq(B, batch_block)

    # bf16 operands at the kernel boundary: halves HBM traffic and feeds the MXU
    # its native dtype; accumulation stays f32 inside the kernel.
    mxu_dtype = jnp.bfloat16
    q = Qp.astype(mxu_dtype)
    k = Kp.astype(mxu_dtype)
    v = Vp.astype(mxu_dtype)
    wfc_t = w_fc.T.astype(mxu_dtype)          # (H*d_k, d_model)

    kernel = functools.partial(_mha_kernel, n_heads=n_heads, d_k=d_k)

    return pl.pallas_call(
        kernel,
        out_shape=jax.ShapeDtypeStruct((B, S, d_model), jnp.float32),
        grid_spec=pltpu.PrefetchScalarGridSpec(
            num_scalar_prefetch=0,
            grid=(B // b_blk,),
            in_specs=[
                pl.BlockSpec((b_blk, S, C), lambda b: (b, 0, 0)),
                pl.BlockSpec((b_blk, S, C), lambda b: (b, 0, 0)),
                pl.BlockSpec((b_blk, S, C), lambda b: (b, 0, 0)),
                pl.BlockSpec((C, d_model), lambda b: (0, 0)),      # grid-invariant
            ],
            out_specs=pl.BlockSpec((b_blk, S, d_model), lambda b: (b, 0, 0)),
        ),
        compiler_params=pltpu.CompilerParams(
            dimension_semantics=("parallel",),   # batch-block axis; megacore-shardable
        ),
    )(q, k, v, wfc_t)


def _project_quirky(x, w, b):
    """nn.Conv1d(d_model, H*d_k, k=1) on x.transpose(1,2), then the module's exact
    `.view(B, -1, H, d_k)` applied to the contiguous channel-first conv output.
    Returned as a lane-dense [B, S, H*d_k] tensor (head h = lanes [h*d_k,(h+1)*d_k))."""
    B, S, _ = x.shape
    C = w.shape[0]
    proj_cs = jnp.einsum('bsm,cm->bcs', x, w) + b[None, :, None]   # [B, H*d_k, S]
    # Row-major reinterpretation of the [C, S] buffer as [S, H*d_k] == torch .view.
    return proj_cs.reshape(B, S, C)


def multihead_cross_attention_forward(input_Q, input_K, input_V, params,
                                      *, n_heads, d_k, batch_block=8):
    """Matches multihead_cross_attention.forward.  (The module's FFN member is
    constructed but never called in forward, so it is intentionally omitted.)"""
    scale = 1.0 / math.sqrt(d_k)
    # Fold 1/sqrt(d_k) into the Q projection weights AND bias at trace time.
    Qp = _project_quirky(input_Q, params['wq'] * scale, params['bq'] * scale)
    Kp = _project_quirky(input_K, params['wk'], params['bk'])
    Vp = _project_quirky(input_V, params['wv'], params['bv'])
    # Attention + output Linear fused in one Pallas kernel.
    return _mha_attention_fc(Qp, Kp, Vp, params['wfc'],
                             n_heads=n_heads, d_k=d_k, batch_block=batch_block)


def _reference_forward(input_Q, input_K, input_V, params, *, n_heads, d_k):
    """Pure-JAX f32 mirror of the PyTorch module, for correctness checking."""
    B, S, _ = input_Q.shape

    def proj(x, w, b):
        cs = jnp.einsum('bsm,cm->bcs', x, w) + b[None, :, None]           # [B, C, S]
        return cs.reshape(B, S, n_heads, d_k).transpose(0, 2, 1, 3)       # view quirk

    Q = proj(input_Q, params['wq'], params['bq'])
    K = proj(input_K, params['wk'], params['bk'])
    V = proj(input_V, params['wv'], params['bv'])
    scores = jnp.matmul(Q, jnp.swapaxes(K, -1, -2)) / math.sqrt(d_k)
    attn = jax.nn.softmax(scores, axis=-1)
    ctx = jnp.matmul(attn, V)                                             # [B, H, S, d_k]
    ctx = ctx.transpose(0, 2, 1, 3).reshape(B, S, n_heads * d_k)
    return ctx @ params['wfc'].T


if __name__ == "__main__":
    # Small shapes: seq=8, d_model=128 (lane-dense output), 2 heads of d_k=32.
    # batch=16 so the batch-blocked grid has >1 step (B_blk=8 -> grid=(2,)).
    B, S, d_model, n_heads, d_k = 16, 8, 128, 2, 32
    C = n_heads * d_k

    key = jax.random.PRNGKey(0)
    ks = jax.random.split(key, 10)
    input_Q = jax.random.normal(ks[0], (B, S, d_model), dtype=jnp.float32)
    input_K = jax.random.normal(ks[1], (B, S, d_model), dtype=jnp.float32)
    input_V = jax.random.normal(ks[2], (B, S, d_model), dtype=jnp.float32)

    def init(k, shape, fan_in):
        return jax.random.normal(k, shape, dtype=jnp.float32) / math.sqrt(fan_in)

    params = {
        'wq': init(ks[3], (C, d_model), d_model), 'bq': init(ks[4], (C,), d_model),
        'wk': init(ks[5], (C, d_model), d_model), 'bk': init(ks[6], (C,), d_model),
        'wv': init(ks[7], (C, d_model), d_model), 'bv': init(ks[8], (C,), d_model),
        'wfc': init(ks[9], (d_model, C), C),   # nn.Linear(C, d_model, bias=False)
    }

    fwd = jax.jit(functools.partial(multihead_cross_attention_forward,
                                    n_heads=n_heads, d_k=d_k))
    out = jax.block_until_ready(fwd(input_Q, input_K, input_V, params))

    ref = _reference_forward(input_Q, input_K, input_V, params,
                             n_heads=n_heads, d_k=d_k)
    assert out.shape == (B, S, d_model)
    # Tolerance accounts for bf16 MXU operands (f32 accumulation) and the
    # approximate EUP reciprocal in the softmax denominator.
    assert jnp.allclose(out, ref, atol=3e-2, rtol=3e-2), "mismatch vs reference"

    print("KERNEL_OK")
</pallas_src>

<mosaic_0001>
module attributes {stable_mosaic.version = 11 : i64} {
  func.func @_mha_kernel(%arg0: i32, %arg1: memref<8x8x64xbf16, #tpu.memory_space<vmem>>, %arg2: memref<8x8x64xbf16, #tpu.memory_space<vmem>>, %arg3: memref<8x8x64xbf16, #tpu.memory_space<vmem>>, %arg4: memref<64x128xbf16, #tpu.memory_space<vmem>>, %arg5: memref<8x8x128xf32, #tpu.memory_space<vmem>>) attributes {dimension_semantics = [#tpu.dimension_semantics<parallel>], iteration_bounds = array<i64: 2>, scalar_prefetch = 0 : i64, scratch_operands = 0 : i64, tpu.core_type = #tpu.core_type<tc>, window_params = [{transform_indices = @transform_0, window_bounds = array<i64: 8, 8, 64>}, {transform_indices = @transform_1, window_bounds = array<i64: 8, 8, 64>}, {transform_indices = @transform_2, window_bounds = array<i64: 8, 8, 64>}, {pipeline_mode = #tpu.pipeline_mode<synchronous>, transform_indices = @transform_3, window_bounds = array<i64: 64, 128>}, {transform_indices = @transform_4, window_bounds = array<i64: 8, 8, 128>}]} {
    %c0 = arith.constant 0 : index
    %c0_0 = arith.constant 0 : index
    %c0_1 = arith.constant 0 : index
    %0 = vector.load %arg1[%c0, %c0_0, %c0_1] : memref<8x8x64xbf16, #tpu.memory_space<vmem>>, vector<8x8x32xbf16>
    %c0_2 = arith.constant 0 : index
    %c0_3 = arith.constant 0 : index
    %c0_4 = arith.constant 0 : index
    %1 = vector.load %arg2[%c0_2, %c0_3, %c0_4] : memref<8x8x64xbf16, #tpu.memory_space<vmem>>, vector<8x8x32xbf16>
    %c0_5 = arith.constant 0 : index
    %c0_6 = arith.constant 0 : index
    %c0_7 = arith.constant 0 : index
    %2 = vector.load %arg3[%c0_5, %c0_6, %c0_7] : memref<8x8x64xbf16, #tpu.memory_space<vmem>>, vector<8x8x32xbf16>
    "tpu.trace_start"() <{level = 10 : i32, message = "bqc,bkc->bqk"}> : () -> ()
    %cst = arith.constant dense<0.000000e+00> : vector<8x8x8xf32>
    %3 = tpu.matmul %0, %1, %cst {dimension_numbers = #tpu.dot_dimension_numbers<[2], [2], [1], [1], [0, 0, 0, 1, 1, 1], [0], [0]>} : vector<8x8x32xbf16>, vector<8x8x32xbf16>, vector<8x8x8xf32> -> vector<8x8x8xf32>
    "tpu.trace_stop"() : () -> ()
    %cst_8 = arith.constant dense<0xFF800000> : vector<8x8xf32>
    %4 = vector.multi_reduction <maximumf>, %3, %cst_8 [2] : vector<8x8x8xf32> to vector<8x8xf32>
    %5 = vector.shape_cast %4 : vector<8x8xf32> to vector<8x8x1xf32>
    %6 = vector.broadcast %5 : vector<8x8x1xf32> to vector<8x8x8xf32>
    %7 = arith.subf %3, %6 : vector<8x8x8xf32>
    %8 = math.exp %7 : vector<8x8x8xf32>
    %cst_9 = arith.constant dense<0.000000e+00> : vector<8x8xf32>
    %9 = vector.multi_reduction <add>, %8, %cst_9 [2] : vector<8x8x8xf32> to vector<8x8xf32>
    %10 = vector.shape_cast %9 : vector<8x8xf32> to vector<8x8x1xf32>
    %11 = tpu.reciprocal %10 {approx = true} : vector<8x8x1xf32> -> vector<8x8x1xf32>
    %12 = vector.broadcast %11 : vector<8x8x1xf32> to vector<8x8x8xf32>
    %13 = arith.mulf %8, %12 : vector<8x8x8xf32>
    %14 = arith.truncf %13 : vector<8x8x8xf32> to vector<8x8x8xbf16>
    "tpu.trace_start"() <{level = 10 : i32, message = "bqk,bkc->bqc"}> : () -> ()
    %cst_10 = arith.constant dense<0.000000e+00> : vector<8x8x32xf32>
    %15 = tpu.matmul %14, %2, %cst_10 {dimension_numbers = #tpu.dot_dimension_numbers<[2], [1], [1], [2], [0, 0, 0, 1, 1, 2], [0], [0]>} : vector<8x8x8xbf16>, vector<8x8x32xbf16>, vector<8x8x32xf32> -> vector<8x8x32xf32>
    "tpu.trace_stop"() : () -> ()
    %16 = arith.truncf %15 : vector<8x8x32xf32> to vector<8x8x32xbf16>
    %c0_11 = arith.constant 0 : index
    %c0_12 = arith.constant 0 : index
    %c32 = arith.constant 32 : index
    %17 = vector.load %arg1[%c0_11, %c0_12, %c32] : memref<8x8x64xbf16, #tpu.memory_space<vmem>>, vector<8x8x32xbf16>
    %c0_13 = arith.constant 0 : index
    %c0_14 = arith.constant 0 : index
    %c32_15 = arith.constant 32 : index
    %18 = vector.load %arg2[%c0_13, %c0_14, %c32_15] : memref<8x8x64xbf16, #tpu.memory_space<vmem>>, vector<8x8x32xbf16>
    %c0_16 = arith.constant 0 : index
    %c0_17 = arith.constant 0 : index
    %c32_18 = arith.constant 32 : index
    %19 = vector.load %arg3[%c0_16, %c0_17, %c32_18] : memref<8x8x64xbf16, #tpu.memory_space<vmem>>, vector<8x8x32xbf16>
    "tpu.trace_start"() <{level = 10 : i32, message = "bqc,bkc->bqk"}> : () -> ()
    %cst_19 = arith.constant dense<0.000000e+00> : vector<8x8x8xf32>
    %20 = tpu.matmul %17, %18, %cst_19 {dimension_numbers = #tpu.dot_dimension_numbers<[2], [2], [1], [1], [0, 0, 0, 1, 1, 1], [0], [0]>} : vector<8x8x32xbf16>, vector<8x8x32xbf16>, vector<8x8x8xf32> -> vector<8x8x8xf32>
    "tpu.trace_stop"() : () -> ()
    %cst_20 = arith.constant dense<0xFF800000> : vector<8x8xf32>
    %21 = vector.multi_reduction <maximumf>, %20, %cst_20 [2] : vector<8x8x8xf32> to vector<8x8xf32>
    %22 = vector.shape_cast %21 : vector<8x8xf32> to vector<8x8x1xf32>
    %23 = vector.broadcast %22 : vector<8x8x1xf32> to vector<8x8x8xf32>
    %24 = arith.subf %20, %23 : vector<8x8x8xf32>
    %25 = math.exp %24 : vector<8x8x8xf32>
    %cst_21 = arith.constant dense<0.000000e+00> : vector<8x8xf32>
    %26 = vector.multi_reduction <add>, %25, %cst_21 [2] : vector<8x8x8xf32> to vector<8x8xf32>
    %27 = vector.shape_cast %26 : vector<8x8xf32> to vector<8x8x1xf32>
    %28 = tpu.reciprocal %27 {approx = true} : vector<8x8x1xf32> -> vector<8x8x1xf32>
    %29 = vector.broadcast %28 : vector<8x8x1xf32> to vector<8x8x8xf32>
    %30 = arith.mulf %25, %29 : vector<8x8x8xf32>
    %31 = arith.truncf %30 : vector<8x8x8xf32> to vector<8x8x8xbf16>
    "tpu.trace_start"() <{level = 10 : i32, message = "bqk,bkc->bqc"}> : () -> ()
    %cst_22 = arith.constant dense<0.000000e+00> : vector<8x8x32xf32>
    %32 = tpu.matmul %31, %19, %cst_22 {dimension_numbers = #tpu.dot_dimension_numbers<[2], [1], [1], [2], [0, 0, 0, 1, 1, 2], [0], [0]>} : vector<8x8x8xbf16>, vector<8x8x32xbf16>, vector<8x8x32xf32> -> vector<8x8x32xf32>
    "tpu.trace_stop"() : () -> ()
    %33 = arith.truncf %32 : vector<8x8x32xf32> to vector<8x8x32xbf16>
    %34 = tpu.concatenate %16, %33 in 2 : vector<8x8x32xbf16>, vector<8x8x32xbf16> -> vector<8x8x64xbf16>
    %35 = vector.shape_cast %34 : vector<8x8x64xbf16> to vector<64x64xbf16>
    %c0_23 = arith.constant 0 : index
    %c0_24 = arith.constant 0 : index
    %36 = vector.load %arg4[%c0_23, %c0_24] : memref<64x128xbf16, #tpu.memory_space<vmem>>, vector<64x128xbf16>
    %cst_25 = arith.constant dense<0.000000e+00> : vector<64x128xf32>
    %37 = tpu.matmul %35, %36, %cst_25 {dimension_numbers = #tpu.dot_dimension_numbers<[1], [0], [0], [1], [0, 0, 1, 1], [], []>} : vector<64x64xbf16>, vector<64x128xbf16>, vector<64x128xf32> -> vector<64x128xf32>
    %38 = vector.shape_cast %37 : vector<64x128xf32> to vector<8x8x128xf32>
    %c0_26 = arith.constant 0 : index
    %c0_27 = arith.constant 0 : index
    %c0_28 = arith.constant 0 : index
    %39 = vector.load %arg5[%c0_26, %c0_27, %c0_28] : memref<8x8x128xf32, #tpu.memory_space<vmem>>, vector<8x8x128xf32>
    tpu.vector_store %arg5[%c0_26, %c0_27, %c0_28], %38 {strides = array<i32>} : memref<8x8x128xf32, #tpu.memory_space<vmem>>, vector<8x8x128xf32>,
    return
  }
  func.func @transform_0(%arg0: i32) -> (i32, i32, i32) {
    %c0_i32 = arith.constant 0 : i32
    %c0_i32_0 = arith.constant 0 : i32
    %c0_i32_1 = arith.constant 0 : i32
    return %arg0, %c0_i32, %c0_i32_0 : i32, i32, i32
  }
  func.func @transform_1(%arg0: i32) -> (i32, i32, i32) {
    %c0_i32 = arith.constant 0 : i32
    %c0_i32_0 = arith.constant 0 : i32
    %c0_i32_1 = arith.constant 0 : i32
    return %arg0, %c0_i32, %c0_i32_0 : i32, i32, i32
  }
  func.func @transform_2(%arg0: i32) -> (i32, i32, i32) {
    %c0_i32 = arith.constant 0 : i32
    %c0_i32_0 = arith.constant 0 : i32
    %c0_i32_1 = arith.constant 0 : i32
    return %arg0, %c0_i32, %c0_i32_0 : i32, i32, i32
  }
  func.func @transform_3(%arg0: i32) -> (i32, i32) {
    %c0_i32 = arith.constant 0 : i32
    %c0_i32_0 = arith.constant 0 : i32
    %c0_i32_1 = arith.constant 0 : i32
    return %c0_i32, %c0_i32_0 : i32, i32
  }
  func.func @transform_4(%arg0: i32) -> (i32, i32, i32) {
    %c0_i32 = arith.constant 0 : i32
    %c0_i32_0 = arith.constant 0 : i32
    %c0_i32_1 = arith.constant 0 : i32
    return %arg0, %c0_i32, %c0_i32_0 : i32, i32, i32
  }
}

</mosaic_0001>

<llo_original>
// kernel: multihead_cross_attention_forward.1
$region0: #{multihead_cross_attention_forward.1}
  #allocation0 [shape = 'u32[]', space=smem, size = 0x4, offset = 0x4, fixed_abs, tag = 'smem constant byte address 0x4 - core index']
  #allocation1 [shape = 'u32[72,128]{1,0:T(1,128)}', space=vmem, size = 0x9000, scoped, tag = 'internal scratch']
  %s0 = inlined_call_operand.vmem [shape: bf16[16,8,64], index: 0, kind: input, shape index: {}]
  %s1 = inlined_call_operand.vmem [shape: bf16[16,8,64], index: 1, kind: input, shape index: {}]
  %s2 = inlined_call_operand.vmem [shape: bf16[16,8,64], index: 2, kind: input, shape index: {}]
  %s3 = inlined_call_operand.vmem [shape: bf16[64,128], index: 3, kind: input, shape index: {}]
  %s4 = inlined_call_operand.hbm [shape: f32[16,8,128], index: 4, kind: output, shape index: {}]
  %s5 = sld [smem:[#allocation0]]
  $region49: #{multihead_cross_attention_forward.1} parent=0
    _
  %s7 = ssub.s32 1, %s5
  %s8 = scalar_select 0, %s7, %s5
  $region1: #{multihead_cross_attention_forward.1} parent=0
    #allocation2 [shape = 'u8[65536]{0}', space=vmem, size = 0x10000, scoped, tag = 'output window, operand 0']
    #allocation3 [shape = 's32[2]{0}', space=sflag, size = 0x8, scoped, tag = 'scoped memory for multihead_cross_attention_forward.1']
    %9 = vsyncpa [#allocation3], 0
    %s10 = scalar_lea.sflag [#allocation3], 1
    %11 = vsyncpa %s10, 0
    loop: start=0, step=1, limit=4
    $region2: #{multihead_cross_attention_forward.1} parent=1 // loop_pre_header
      _
    $region3: #{multihead_cross_attention_forward.1} parent=1 // loop_header
      %s13 = sphi 0, %s17
      %p14 = scmp.ge.s32.totalorder %s13, 4
      %s23 = sphi 0, %s25
      %s26 = sphi 0, %s23
      %s27 = sphi 0, %s26
      %s43 = sphi 0, %s27
      %s49 = sphi 0, %s51
      %s52 = sphi 0, %s49
      %s53 = sphi 0, %s52
      %s69 = sphi 0, %s53
      %s75 = sphi 0, %s77
      %s78 = sphi 0, %s75
      %s79 = sphi 0, %s78
      %s95 = sphi 0, %s79
      %s99 = sphi 0, %s99
      %s101 = sphi 0, %s99
      %s102 = sphi 0, %s101
      %s116 = sphi 0, %s102
      %s122 = sphi 0, %s124
      %s125 = sphi 0, %s122
      %s126 = sphi 0, %s125
      %s142 = sphi 0, %s126
    $region4: #{multihead_cross_attention_forward.1} parent=1 // loop_header_branch
      %16 = sbr.rel (%p14) target = $region8
    $region5: #{multihead_cross_attention_forward.1} parent=1 // loop_body
      %s18 = ssub.s32 %s13, 1
      %s19 = ssub.s32 %s13, 2
      %s20 = sadd.s32 %s13, 1
      %s21 = ssub.s32 %s13, %s20
      %p22 = scmp.eq.s32.totalorder %s21, 0
      %s24 = sadd.s32 %s23, 1
      %s25 = scalar_select %p22, %s23, %s24
      %p28 = pneg %p22
      %p29 = scmp.eq.s32.totalorder %s13, 1
      %p30 = por %p28, %p29
      %p31 = scmp.ne.s32.totalorder %s23, %s26
      %p32 = scmp.eq.s32.totalorder %s13, 0
      %p33 = por %p31, %p32
      %p34 = scmp.ne.s32.totalorder %s23, %s26
      %p35 = scmp.eq.s32.totalorder %s18, 1
      %p36 = por %p34, %p35
      %p37 = scmp.ne.s32.totalorder %s26, %s27
      %p38 = scmp.eq.s32.totalorder %s18, 0
      %p39 = por %p37, %p38
      %p40 = scmp.ne.s32.totalorder %s26, %s27
      %p41 = scmp.eq.s32.totalorder %s19, 1
      %p42 = por %p40, %p41
      %p44 = scmp.ne.s32.totalorder %s27, %s43
      %p45 = scmp.eq.s32.totalorder %s19, 0
      %p46 = por %p44, %p45
      %s47 = ssub.s32 %s13, %s20
      %p48 = scmp.eq.s32.totalorder %s47, 0
      %s50 = sadd.s32 %s49, 1
      %s51 = scalar_select %p48, %s49, %s50
      %p54 = pneg %p48
      %p55 = scmp.eq.s32.totalorder %s13, 1
      %p56 = por %p54, %p55
      %p57 = scmp.ne.s32.totalorder %s49, %s52
      %p58 = scmp.eq.s32.totalorder %s13, 0
      %p59 = por %p57, %p58
      %p60 = scmp.ne.s32.totalorder %s49, %s52
      %p61 = scmp.eq.s32.totalorder %s18, 1
      %p62 = por %p60, %p61
      %p63 = scmp.ne.s32.totalorder %s52, %s53
      %p64 = scmp.eq.s32.totalorder %s18, 0
      %p65 = por %p63, %p64
      %p66 = scmp.ne.s32.totalorder %s52, %s53
      %p67 = scmp.eq.s32.totalorder %s19, 1
      %p68 = por %p66, %p67
      %p70 = scmp.ne.s32.totalorder %s53, %s69
      %p71 = scmp.eq.s32.totalorder %s19, 0
      %p72 = por %p70, %p71
      %s73 = ssub.s32 %s13, %s20
      %p74 = scmp.eq.s32.totalorder %s73, 0
      %s76 = sadd.s32 %s75, 1
      %s77 = scalar_select %p74, %s75, %s76
      %p80 = pneg %p74
      %p81 = scmp.eq.s32.totalorder %s13, 1
      %p82 = por %p80, %p81
      %p83 = scmp.ne.s32.totalorder %s75, %s78
      %p84 = scmp.eq.s32.totalorder %s13, 0
      %p85 = por %p83, %p84
      %p86 = scmp.ne.s32.totalorder %s75, %s78
      %p87 = scmp.eq.s32.totalorder %s18, 1
      %p88 = por %p86, %p87
      %p89 = scmp.ne.s32.totalorder %s78, %s79
      %p90 = scmp.eq.s32.totalorder %s18, 0
      %p91 = por %p89, %p90
      %p92 = scmp.ne.s32.totalorder %s78, %s79
      %p93 = scmp.eq.s32.totalorder %s19, 1
      %p94 = por %p92, %p93
      %p96 = scmp.ne.s32.totalorder %s79, %s95
      %p97 = scmp.eq.s32.totalorder %s19, 0
      %p98 = por %p96, %p97
      %s100 = sadd.s32 %s99, 1
      %p103 = scmp.eq.s32.totalorder %s13, 1
      %p104 = scmp.ne.s32.totalorder %s99, %s101
      %p105 = scmp.eq.s32.totalorder %s13, 0
      %p106 = por %p104, %p105
      %p107 = scmp.ne.s32.totalorder %s99, %s101
      %p108 = scmp.eq.s32.totalorder %s18, 1
      %p109 = por %p107, %p108
      %p110 = scmp.ne.s32.totalorder %s101, %s102
      %p111 = scmp.eq.s32.totalorder %s18, 0
      %p112 = por %p110, %p111
      %p113 = scmp.ne.s32.totalorder %s101, %s102
      %p114 = scmp.eq.s32.totalorder %s19, 1
      %p115 = por %p113, %p114
      %p117 = scmp.ne.s32.totalorder %s102, %s116
      %p118 = scmp.eq.s32.totalorder %s19, 0
      %p119 = por %p117, %p118
      %s120 = ssub.s32 %s13, %s20
      %p121 = scmp.eq.s32.totalorder %s120, 0
      %s123 = sadd.s32 %s122, 1
      %s124 = scalar_select %p121, %s122, %s123
      %p127 = pneg %p121
      %p128 = scmp.eq.s32.totalorder %s13, 1
      %p129 = por %p127, %p128
      %p130 = scmp.ne.s32.totalorder %s122, %s125
      %p131 = scmp.eq.s32.totalorder %s13, 0
      %p132 = por %p130, %p131
      %p133 = scmp.ne.s32.totalorder %s122, %s125
      %p134 = scmp.eq.s32.totalorder %s18, 1
      %p135 = por %p133, %p134
      %p136 = scmp.ne.s32.totalorder %s125, %s126
      %p137 = scmp.eq.s32.totalorder %s18, 0
      %p138 = por %p136, %p137
      %p139 = scmp.ne.s32.totalorder %s125, %s126
      %p140 = scmp.eq.s32.totalorder %s19, 1
      %p141 = por %p139, %p140
      %p143 = scmp.ne.s32.totalorder %s126, %s142
      %p144 = scmp.eq.s32.totalorder %s19, 0
      %p145 = por %p143, %p144
      %p146 = scmp.le.s32.totalorder 1, %s13
      %p147 = scmp.lt.s32.totalorder %s13, 3
      %p148 = pnand %p146, %p147
      %p149 = pneg %p148
      // Predicated region
      $region9: #{multihead_cross_attention_forward.1} parent=5 // pred_check
        _
      $region10: #{multihead_cross_attention_forward.1} parent=5 // pred_check_branch
        %151 = sbr.rel (%p148) target = $region12
      $region11: #{multihead_cross_attention_forward.1} parent=5 // pred_region
        %s152 = ssub.s32 %s13, 1
        // Predicated region
        $region13: #{multihead_cross_attention_forward.1} parent=11 // pred_check
          %p153 = pneg %p112
        $region14: #{multihead_cross_attention_forward.1} parent=11 // pred_check_branch
          %155 = sbr.rel (%p153) target = $region16
        $region15: #{multihead_cross_attention_forward.1} parent=11 // pred_region
          _
        $region16: #{multihead_cross_attention_forward.1} parent=11 // pred_fallthru
          _
      $region12: #{multihead_cross_attention_forward.1} parent=5 // pred_fallthru
        _
      %p156 = scmp.lt.s32.totalorder %s13, 2
      // Predicated region
      $region17: #{multihead_cross_attention_forward.1} parent=5 // pred_check
        %p157 = pneg %p156
      $region18: #{multihead_cross_attention_forward.1} parent=5 // pred_check_branch
        %159 = sbr.rel (%p157) target = $region20
      $region19: #{multihead_cross_attention_forward.1} parent=5 // pred_region
        // Predicated region
        $region21: #{multihead_cross_attention_forward.1} parent=19 // pred_check
          %p160 = pneg %p33
        $region22: #{multihead_cross_attention_forward.1} parent=19 // pred_check_branch
          %162 = sbr.rel (%p160) target = $region24
        $region23: #{multihead_cross_attention_forward.1} parent=19 // pred_region
          %s163 = smul.u32 8, %s13
          %p164 = scmp.lt.s32.totalorder %s163, 15
          %s165 = scalar_select %p164, %s163, 15
          %s166 = smul.addr %s165, 4
          %s167 = scalar_lea.vmem %s0, %s166
          %s168 = smul.u32 8, %s13
        $region24: #{multihead_cross_attention_forward.1} parent=19 // pred_fallthru
          _
        // Predicated region
        $region25: #{multihead_cross_attention_forward.1} parent=19 // pred_check
          %p169 = pneg %p59
        $region26: #{multihead_cross_attention_forward.1} parent=19 // pred_check_branch
          %171 = sbr.rel (%p169) target = $region28
        $region27: #{multihead_cross_attention_forward.1} parent=19 // pred_region
          %s172 = smul.u32 8, %s13
          %p173 = scmp.lt.s32.totalorder %s172, 15
          %s174 = scalar_select %p173, %s172, 15
          %s175 = smul.addr %s174, 4
          %s176 = scalar_lea.vmem %s1, %s175
          %s177 = smul.u32 8, %s13
        $region28: #{multihead_cross_attention_forward.1} parent=19 // pred_fallthru
          _
        // Predicated region
        $region29: #{multihead_cross_attention_forward.1} parent=19 // pred_check
          %p178 = pneg %p85
        $region30: #{multihead_cross_attention_forward.1} parent=19 // pred_check_branch
          %180 = sbr.rel (%p178) target = $region32
        $region31: #{multihead_cross_attention_forward.1} parent=19 // pred_region
          %s181 = smul.u32 8, %s13
          %p182 = scmp.lt.s32.totalorder %s181, 15
          %s183 = scalar_select %p182, %s181, 15
          %s184 = smul.addr %s183, 4
          %s185 = scalar_lea.vmem %s2, %s184
          %s186 = smul.u32 8, %s13
        $region32: #{multihead_cross_attention_forward.1} parent=19 // pred_fallthru
          _
      $region20: #{multihead_cross_attention_forward.1} parent=5 // pred_fallthru
        _
      %p187 = scmp.le.s32.totalorder 1, %s13
      %p188 = scmp.lt.s32.totalorder %s13, 3
      %p189 = pnand %p187, %p188
      %p190 = pneg %p189
      // Predicated region
      $region33: #{multihead_cross_attention_forward.1} parent=5 // pred_check
        _
      $region34: #{multihead_cross_attention_forward.1} parent=5 // pred_check_branch
        %192 = sbr.rel (%p189) target = $region36
      $region35: #{multihead_cross_attention_forward.1} parent=5 // pred_region
        %s193 = ssub.s32 %s13, 1
        %s194 = smul.u32 8, %s18
        %p195 = scmp.lt.s32.totalorder %s194, 15
        %s196 = scalar_select %p195, %s194, 15
        %s197 = smul.addr %s196, 4
        %s198 = scalar_lea.vmem %s0, %s197
        %p199 = pneg %p39
        %p200 = pneg %p36
        %s201 = smul.u32 8, %s18
        %p202 = scmp.lt.s32.totalorder %s201, 15
        %s203 = scalar_select %p202, %s201, 15
        %s204 = smul.addr %s203, 4
        %s205 = scalar_lea.vmem %s1, %s204
        %p206 = pneg %p65
        %p207 = pneg %p62
        %s208 = smul.u32 8, %s18
        %p209 = scmp.lt.s32.totalorder %s208, 15
        %s210 = scalar_select %p209, %s208, 15
        %s211 = smul.addr %s210, 4
        %s212 = scalar_lea.vmem %s2, %s211
        %p213 = pneg %p91
        %p214 = pneg %p88
        %p215 = pneg %p112
        %p216 = pneg %p109
        %p217 = pneg %p138
        %p218 = pneg %p135
        %s219 = sand.u32 %s125, 1
        %s220 = scalar_lea.sflag [#allocation3], %s219
        %s221 = sand.u32 %s125, 1
        %s222 = smul.addr %s221, 64
        %s223 = scalar_lea.vmem [#allocation2], %s222
        %s224 = smul.u32 8, %s18
        %p225 = scmp.lt.s32.totalorder %s224, 15
        %s226 = scalar_select %p225, %s224, 15
        %s227 = smul.addr %s226, 4
        %s228 = scalar_lea.vmem %s0, %s227
        %s229 = smul.u32 8, %s18
        %s230 = smul.u32 8, %s18
        %p231 = scmp.lt.s32.totalorder %s230, 15
        %s232 = scalar_select %p231, %s230, 15
        %s233 = smul.addr %s232, 4
        %s234 = scalar_lea.vmem %s1, %s233
        %s235 = smul.u32 8, %s18
        %s236 = smul.u32 8, %s18
        %p237 = scmp.lt.s32.totalorder %s236, 15
        %s238 = scalar_select %p237, %s236, 15
        %s239 = smul.addr %s238, 4
        %s240 = scalar_lea.vmem %s2, %s239
        %s241 = smul.u32 8, %s18
        %s242 = smul.u32 8, %s18
        %v244 = vld [vmem:[%s228] sm:$0xf]
        %v245 = vld [vmem:[%s228 + $0x4] sm:$0xf]
        %v246 = vld [vmem:[%s228 + $0x8] sm:$0xf]
        %v247 = vld [vmem:[%s228 + $0xc] sm:$0xf]
        %v248 = vld [vmem:[%s228 + $0x10] sm:$0xf]
        %v249 = vld [vmem:[%s228 + $0x14] sm:$0xf]
        %v250 = vld [vmem:[%s228 + $0x18] sm:$0xf]
        %v251 = vld [vmem:[%s228 + $0x1c] sm:$0xf]
        %v252 = vld [vmem:[%s234] sm:$0xf]
        %v253 = vld [vmem:[%s234 + $0x4] sm:$0xf]
        %v254 = vld [vmem:[%s234 + $0x8] sm:$0xf]
        %v255 = vld [vmem:[%s234 + $0xc] sm:$0xf]
        %v256 = vld [vmem:[%s234 + $0x10] sm:$0xf]
        %v257 = vld [vmem:[%s234 + $0x14] sm:$0xf]
        %v258 = vld [vmem:[%s234 + $0x18] sm:$0xf]
        %v259 = vld [vmem:[%s234 + $0x1c] sm:$0xf]
        %v260 = vld [vmem:[%s240] sm:$0xf]
        %v261 = vld [vmem:[%s240 + $0x4] sm:$0xf]
        %v262 = vld [vmem:[%s240 + $0x8] sm:$0xf]
        %v263 = vld [vmem:[%s240 + $0xc] sm:$0xf]
        %v264 = vld [vmem:[%s240 + $0x10] sm:$0xf]
        %v265 = vld [vmem:[%s240 + $0x14] sm:$0xf]
        %v266 = vld [vmem:[%s240 + $0x18] sm:$0xf]
        %v267 = vld [vmem:[%s240 + $0x1c] sm:$0xf]
        %vm268 = vcmask 261120
        %v270 = vsel %vm268, %v244, 0
        %v273 = vsel %vm268, %v252, 0
        %275 = vmatpush.bf16.xpose.msra.mxu0 0
        %276 = vmatpush.bf16.xpose.msra.mxu0 0
        %277 = vmatpush.bf16.xpose.msra.mxu0 0
        %278 = vmatpush.bf16.xpose.msra.mxu0 0
        %279 = vmatpush.bf16.xpose.msra.mxu0 0
        %280 = vmatpush.bf16.xpose.msra.mxu0 0
        %281 = vmatpush.bf16.xpose.msra.mxu0 0
        %282 = vmatpush.bf16.xpose.msra.mxu0 %v273
        %283 = vmatmul.bf16.gmra.mxu0 %v270
        %v284 = vpop.f32.mrf.mxu0
        %v285 = vadd.f32 0.0, %v284
        %v286 = vpop.f32.mrf.mxu0
        %287 = vdwg.mxu0
        %v289 = vsel %vm268, %v245, 0
        %v292 = vsel %vm268, %v253, 0
        %294 = vmatpush.bf16.xpose.msra.mxu0 0
        %295 = vmatpush.bf16.xpose.msra.mxu0 0
        %296 = vmatpush.bf16.xpose.msra.mxu0 0
        %297 = vmatpush.bf16.xpose.msra.mxu0 0
        %298 = vmatpush.bf16.xpose.msra.mxu0 0
        %299 = vmatpush.bf16.xpose.msra.mxu0 0
        %300 = vmatpush.bf16.xpose.msra.mxu0 0
        %301 = vmatpush.bf16.xpose.msra.mxu0 %v292
        %302 = vmatmul.bf16.gmra.mxu0 %v289
        %v303 = vpop.f32.mrf.mxu0
        %v304 = vadd.f32 0.0, %v303
        %v305 = vpop.f32.mrf.mxu0
        %306 = vdwg.mxu0
        %v308 = vsel %vm268, %v246, 0
        %v311 = vsel %vm268, %v254, 0
        %313 = vmatpush.bf16.xpose.msra.mxu0 0
        %314 = vmatpush.bf16.xpose.msra.mxu0 0
        %315 = vmatpush.bf16.xpose.msra.mxu0 0
        %316 = vmatpush.bf16.xpose.msra.mxu0 0
        %317 = vmatpush.bf16.xpose.msra.mxu0 0
        %318 = vmatpush.bf16.xpose.msra.mxu0 0
        %319 = vmatpush.bf16.xpose.msra.mxu0 0
        %320 = vmatpush.bf16.xpose.msra.mxu0 %v311
        %321 = vmatmul.bf16.gmra.mxu0 %v308
        %v322 = vpop.f32.mrf.mxu0
        %v323 = vadd.f32 0.0, %v322
        %v324 = vpop.f32.mrf.mxu0
        %325 = vdwg.mxu0
        %v327 = vsel %vm268, %v247, 0
        %v330 = vsel %vm268, %v255, 0
        %332 = vmatpush.bf16.xpose.msra.mxu0 0
        %333 = vmatpush.bf16.xpose.msra.mxu0 0
        %334 = vmatpush.bf16.xpose.msra.mxu0 0
        %335 = vmatpush.bf16.xpose.msra.mxu0 0
        %336 = vmatpush.bf16.xpose.msra.mxu0 0
        %337 = vmatpush.bf16.xpose.msra.mxu0 0
        %338 = vmatpush.bf16.xpose.msra.mxu0 0
        %339 = vmatpush.bf16.xpose.msra.mxu0 %v330
        %340 = vmatmul.bf16.gmra.mxu0 %v327
        %v341 = vpop.f32.mrf.mxu0
        %v342 = vadd.f32 0.0, %v341
        %v343 = vpop.f32.mrf.mxu0
        %344 = vdwg.mxu0
        %v346 = vsel %vm268, %v248, 0
        %v349 = vsel %vm268, %v256, 0
        %351 = vmatpush.bf16.xpose.msra.mxu0 0
        %352 = vmatpush.bf16.xpose.msra.mxu0 0
        %353 = vmatpush.bf16.xpose.msra.mxu0 0
        %354 = vmatpush.bf16.xpose.msra.mxu0 0
        %355 = vmatpush.bf16.xpose.msra.mxu0 0
        %356 = vmatpush.bf16.xpose.msra.mxu0 0
        %357 = vmatpush.bf16.xpose.msra.mxu0 0
        %358 = vmatpush.bf16.xpose.msra.mxu0 %v349
        %359 = vmatmul.bf16.gmra.mxu0 %v346
        %v360 = vpop.f32.mrf.mxu0
        %v361 = vadd.f32 0.0, %v360
        %v362 = vpop.f32.mrf.mxu0
        %363 = vdwg.mxu0
        %v365 = vsel %vm268, %v249, 0
        %v368 = vsel %vm268, %v257, 0
        %370 = vmatpush.bf16.xpose.msra.mxu0 0
        %371 = vmatpush.bf16.xpose.msra.mxu0 0
        %372 = vmatpush.bf16.xpose.msra.mxu0 0
        %373 = vmatpush.bf16.xpose.msra.mxu0 0
        %374 = vmatpush.bf16.xpose.msra.mxu0 0
        %375 = vmatpush.bf16.xpose.msra.mxu0 0
        %376 = vmatpush.bf16.xpose.msra.mxu0 0
        %377 = vmatpush.bf16.xpose.msra.mxu0 %v368
        %378 = vmatmul.bf16.gmra.mxu0 %v365
        %v379 = vpop.f32.mrf.mxu0
        %v380 = vadd.f32 0.0, %v379
        %v381 = vpop.f32.mrf.mxu0
        %382 = vdwg.mxu0
        %v384 = vsel %vm268, %v250, 0
        %v387 = vsel %vm268, %v258, 0
        %389 = vmatpush.bf16.xpose.msra.mxu0 0
        %390 = vmatpush.bf16.xpose.msra.mxu0 0
        %391 = vmatpush.bf16.xpose.msra.mxu0 0
        %392 = vmatpush.bf16.xpose.msra.mxu0 0
        %393 = vmatpush.bf16.xpose.msra.mxu0 0
        %394 = vmatpush.bf16.xpose.msra.mxu0 0
        %395 = vmatpush.bf16.xpose.msra.mxu0 0
        %396 = vmatpush.bf16.xpose.msra.mxu0 %v387
        %397 = vmatmul.bf16.gmra.mxu0 %v384
        %v398 = vpop.f32.mrf.mxu0
        %v399 = vadd.f32 0.0, %v398
        %v400 = vpop.f32.mrf.mxu0
        %401 = vdwg.mxu0
        %v403 = vsel %vm268, %v251, 0
        %v406 = vsel %vm268, %v259, 0
        %408 = vmatpush.bf16.xpose.msra.mxu0 0
        %409 = vmatpush.bf16.xpose.msra.mxu0 0
        %410 = vmatpush.bf16.xpose.msra.mxu0 0
        %411 = vmatpush.bf16.xpose.msra.mxu0 0
        %412 = vmatpush.bf16.xpose.msra.mxu0 0
        %413 = vmatpush.bf16.xpose.msra.mxu0 0
        %414 = vmatpush.bf16.xpose.msra.mxu0 0
        %415 = vmatpush.bf16.xpose.msra.mxu0 %v406
        %416 = vmatmul.bf16.gmra.mxu0 %v403
        %v417 = vpop.f32.mrf.mxu0
        %v418 = vadd.f32 0.0, %v417
        %v419 = vpop.f32.mrf.mxu0
        %420 = vdwg.mxu0
        %vm421 = vcmask 64512
        %v422 = vsel %vm421, %v285, -inf
        %423 = vmax.xlane.f32.xlu0 %v422
        %v424 = vpop.xlane.xlu0 %423
        %v425 = vsel %vm421, %v304, -inf
        %426 = vmax.xlane.f32.xlu0 %v425
        %v427 = vpop.xlane.xlu0 %426
        %v428 = vsel %vm421, %v323, -inf
        %429 = vmax.xlane.f32.xlu0 %v428
        %v430 = vpop.xlane.xlu0 %429
        %v431 = vsel %vm421, %v342, -inf
        %432 = vmax.xlane.f32.xlu0 %v431
        %v433 = vpop.xlane.xlu0 %432
        %v434 = vsel %vm421, %v361, -inf
        %435 = vmax.xlane.f32.xlu0 %v434
        %v436 = vpop.xlane.xlu0 %435
        %v437 = vsel %vm421, %v380, -inf
        %438 = vmax.xlane.f32.xlu0 %v437
        %v439 = vpop.xlane.xlu0 %438
        %v440 = vsel %vm421, %v399, -inf
        %441 = vmax.xlane.f32.xlu0 %v440
        %v442 = vpop.xlane.xlu0 %441
        %v443 = vsel %vm421, %v418, -inf
        %444 = vmax.xlane.f32.xlu0 %v443
        %v445 = vpop.xlane.xlu0 %444
        %v446 = vsub.f32 %v285, %v424
        %v447 = vsub.f32 %v304, %v427
        %v448 = vsub.f32 %v323, %v430
        %v449 = vsub.f32 %v342, %v433
        %v450 = vsub.f32 %v361, %v436
        %v451 = vsub.f32 %v380, %v439
        %v452 = vsub.f32 %v399, %v442
        %v453 = vsub.f32 %v418, %v445
        %v454 = vmul.f32 %v446, 1.442695
        %v455 = vpow.pop %v454
        %v456 = vmul.f32 %v447, 1.442695
        %v457 = vpow.pop %v456
        %v458 = vmul.f32 %v448, 1.442695
        %v459 = vpow.pop %v458
        %v460 = vmul.f32 %v449, 1.442695
        %v461 = vpow.pop %v460
        %v462 = vmul.f32 %v450, 1.442695
        %v463 = vpow.pop %v462
        %v464 = vmul.f32 %v451, 1.442695
        %v465 = vpow.pop %v464
        %v466 = vmul.f32 %v452, 1.442695
        %v467 = vpow.pop %v466
        %v468 = vmul.f32 %v453, 1.442695
        %v469 = vpow.pop %v468
        %v470 = vsel %vm421, %v455, 0.0
        %471 = vadd.xlane.f32.xlu0 %v470
        %v472 = vpop.xlane.xlu0 %471
        %v473 = vsel %vm421, %v457, 0.0
        %474 = vadd.xlane.f32.xlu0 %v473
        %v475 = vpop.xlane.xlu0 %474
        %v476 = vsel %vm421, %v459, 0.0
        %477 = vadd.xlane.f32.xlu0 %v476
        %v478 = vpop.xlane.xlu0 %477
        %v479 = vsel %vm421, %v461, 0.0
        %480 = vadd.xlane.f32.xlu0 %v479
        %v481 = vpop.xlane.xlu0 %480
        %v482 = vsel %vm421, %v463, 0.0
        %483 = vadd.xlane.f32.xlu0 %v482
        %v484 = vpop.xlane.xlu0 %483
        %v485 = vsel %vm421, %v465, 0.0
        %486 = vadd.xlane.f32.xlu0 %v485
        %v487 = vpop.xlane.xlu0 %486
        %v488 = vsel %vm421, %v467, 0.0
        %489 = vadd.xlane.f32.xlu0 %v488
        %v490 = vpop.xlane.xlu0 %489
        %v491 = vsel %vm421, %v469, 0.0
        %492 = vadd.xlane.f32.xlu0 %v491
        %v493 = vpop.xlane.xlu0 %492
        %v494 = vrcp.pop %v472
        %v495 = vrcp.pop %v475
        %v496 = vrcp.pop %v478
        %v497 = vrcp.pop %v481
        %v498 = vrcp.pop %v484
        %v499 = vrcp.pop %v487
        %v500 = vrcp.pop %v490
        %v501 = vrcp.pop %v493
        %v502 = vmul.f32 %v455, %v494
        %v503 = vmul.f32 %v457, %v495
        %v504 = vmul.f32 %v459, %v496
        %v505 = vmul.f32 %v461, %v497
        %v506 = vmul.f32 %v463, %v498
        %v507 = vmul.f32 %v465, %v499
        %v508 = vmul.f32 %v467, %v500
        %v509 = vmul.f32 %v469, %v501
        %v510 = vpack.c.bf16 %v502, %v502
        %v511 = vpack.c.bf16 %v503, %v503
        %v512 = vpack.c.bf16 %v504, %v504
        %v513 = vpack.c.bf16 %v505, %v505
        %v514 = vpack.c.bf16 %v506, %v506
        %v515 = vpack.c.bf16 %v507, %v507
        %v516 = vpack.c.bf16 %v508, %v508
        %v517 = vpack.c.bf16 %v509, %v509
        %v519 = vsel %vm421, %v510, 0
        %vm521 = vcmask 1043456
        %v523 = vsel %vm521, %v260, 0
        %525 = vmatpush.bf16.msra.mxu0 0
        %526 = vmatpush.bf16.msra.mxu0 0
        %527 = vmatpush.bf16.msra.mxu0 0
        %528 = vmatpush.bf16.msra.mxu0 0
        %529 = vmatpush.bf16.msra.mxu0 0
        %530 = vmatpush.bf16.msra.mxu0 0
        %531 = vmatpush.bf16.msra.mxu0 0
        %532 = vmatpush.bf16.msra.mxu0 %v523
        %533 = vmatmul.bf16.gmra.mxu0 %v519
        %v534 = vpop.f32.mrf.mxu0
        %v535 = vadd.f32 0.0, %v534
        %v536 = vpop.f32.mrf.mxu0
        %537 = vdwg.mxu0
        %v539 = vsel %vm421, %v511, 0
        %v542 = vsel %vm521, %v261, 0
        %544 = vmatpush.bf16.msra.mxu0 0
        %545 = vmatpush.bf16.msra.mxu0 0
        %546 = vmatpush.bf16.msra.mxu0 0
        %547 = vmatpush.bf16.msra.mxu0 0
        %548 = vmatpush.bf16.msra.mxu0 0
        %549 = vmatpush.bf16.msra.mxu0 0
        %550 = vmatpush.bf16.msra.mxu0 0
        %551 = vmatpush.bf16.msra.mxu0 %v542
        %552 = vmatmul.bf16.gmra.mxu0 %v539
        %v553 = vpop.f32.mrf.mxu0
        %v554 = vadd.f32 0.0, %v553
        %v555 = vpop.f32.mrf.mxu0
        %556 = vdwg.mxu0
        %v558 = vsel %vm421, %v512, 0
        %v561 = vsel %vm521, %v262, 0
        %563 = vmatpush.bf16.msra.mxu0 0
        %564 = vmatpush.bf16.msra.mxu0 0
        %565 = vmatpush.bf16.msra.mxu0 0
        %566 = vmatpush.bf16.msra.mxu0 0
        %567 = vmatpush.bf16.msra.mxu0 0
        %568 = vmatpush.bf16.msra.mxu0 0
        %569 = vmatpush.bf16.msra.mxu0 0
        %570 = vmatpush.bf16.msra.mxu0 %v561
        %571 = vmatmul.bf16.gmra.mxu0 %v558
        %v572 = vpop.f32.mrf.mxu0
        %v573 = vadd.f32 0.0, %v572
        %v574 = vpop.f32.mrf.mxu0
        %575 = vdwg.mxu0
        %v577 = vsel %vm421, %v513, 0
        %v580 = vsel %vm521, %v263, 0
        %582 = vmatpush.bf16.msra.mxu0 0
        %583 = vmatpush.bf16.msra.mxu0 0
        %584 = vmatpush.bf16.msra.mxu0 0
        %585 = vmatpush.bf16.msra.mxu0 0
        %586 = vmatpush.bf16.msra.mxu0 0
        %587 = vmatpush.bf16.msra.mxu0 0
        %588 = vmatpush.bf16.msra.mxu0 0
        %589 = vmatpush.bf16.msra.mxu0 %v580
        %590 = vmatmul.bf16.gmra.mxu0 %v577
        %v591 = vpop.f32.mrf.mxu0
        %v592 = vadd.f32 0.0, %v591
        %v593 = vpop.f32.mrf.mxu0
        %594 = vdwg.mxu0
        %v596 = vsel %vm421, %v514, 0
        %v599 = vsel %vm521, %v264, 0
        %601 = vmatpush.bf16.msra.mxu0 0
        %602 = vmatpush.bf16.msra.mxu0 0
        %603 = vmatpush.bf16.msra.mxu0 0
        %604 = vmatpush.bf16.msra.mxu0 0
        %605 = vmatpush.bf16.msra.mxu0 0
        %606 = vmatpush.bf16.msra.mxu0 0
        %607 = vmatpush.bf16.msra.mxu0 0
        %608 = vmatpush.bf16.msra.mxu0 %v599
        %609 = vmatmul.bf16.gmra.mxu0 %v596
        %v610 = vpop.f32.mrf.mxu0
        %v611 = vadd.f32 0.0, %v610
        %v612 = vpop.f32.mrf.mxu0
        %613 = vdwg.mxu0
        %v615 = vsel %vm421, %v515, 0
        %v618 = vsel %vm521, %v265, 0
        %620 = vmatpush.bf16.msra.mxu0 0
        %621 = vmatpush.bf16.msra.mxu0 0
        %622 = vmatpush.bf16.msra.mxu0 0
        %623 = vmatpush.bf16.msra.mxu0 0
        %624 = vmatpush.bf16.msra.mxu0 0
        %625 = vmatpush.bf16.msra.mxu0 0
        %626 = vmatpush.bf16.msra.mxu0 0
        %627 = vmatpush.bf16.msra.mxu0 %v618
        %628 = vmatmul.bf16.gmra.mxu0 %v615
        %v629 = vpop.f32.mrf.mxu0
        %v630 = vadd.f32 0.0, %v629
        %v631 = vpop.f32.mrf.mxu0
        %632 = vdwg.mxu0
        %v634 = vsel %vm421, %v516, 0
        %v637 = vsel %vm521, %v266, 0
        %639 = vmatpush.bf16.msra.mxu0 0
        %640 = vmatpush.bf16.msra.mxu0 0
        %641 = vmatpush.bf16.msra.mxu0 0
        %642 = vmatpush.bf16.msra.mxu0 0
        %643 = vmatpush.bf16.msra.mxu0 0
        %644 = vmatpush.bf16.msra.mxu0 0
        %645 = vmatpush.bf16.msra.mxu0 0
        %646 = vmatpush.bf16.msra.mxu0 %v637
        %647 = vmatmul.bf16.gmra.mxu0 %v634
        %v648 = vpop.f32.mrf.mxu0
        %v649 = vadd.f32 0.0, %v648
        %v650 = vpop.f32.mrf.mxu0
        %651 = vdwg.mxu0
        %v653 = vsel %vm421, %v517, 0
        %v656 = vsel %vm521, %v267, 0
        %658 = vmatpush.bf16.msra.mxu0 0
        %659 = vmatpush.bf16.msra.mxu0 0
        %660 = vmatpush.bf16.msra.mxu0 0
        %661 = vmatpush.bf16.msra.mxu0 0
        %662 = vmatpush.bf16.msra.mxu0 0
        %663 = vmatpush.bf16.msra.mxu0 0
        %664 = vmatpush.bf16.msra.mxu0 0
        %665 = vmatpush.bf16.msra.mxu0 %v656
        %666 = vmatmul.bf16.gmra.mxu0 %v653
        %v667 = vpop.f32.mrf.mxu0
        %v668 = vadd.f32 0.0, %v667
        %v669 = vpop.f32.mrf.mxu0
        %670 = vdwg.mxu0
        %v671 = vpack.c.bf16 %v535, %v535
        %v672 = vpack.c.bf16 %v554, %v554
        %v673 = vpack.c.bf16 %v573, %v573
        %v674 = vpack.c.bf16 %v592, %v592
        %v675 = vpack.c.bf16 %v611, %v611
        %v676 = vpack.c.bf16 %v630, %v630
        %v677 = vpack.c.bf16 %v649, %v649
        %v678 = vpack.c.bf16 %v668, %v668
        %v679 = vld [vmem:[%s228] sm:$0xf]
        %v680 = vld [vmem:[%s228 + $0x4] sm:$0xf]
        %v681 = vld [vmem:[%s228 + $0x8] sm:$0xf]
        %v682 = vld [vmem:[%s228 + $0xc] sm:$0xf]
        %v683 = vld [vmem:[%s228 + $0x10] sm:$0xf]
        %v684 = vld [vmem:[%s228 + $0x14] sm:$0xf]
        %v685 = vld [vmem:[%s228 + $0x18] sm:$0xf]
        %v686 = vld [vmem:[%s228 + $0x1c] sm:$0xf]
        %v687 = vld [vmem:[%s234] sm:$0xf]
        %v688 = vld [vmem:[%s234 + $0x4] sm:$0xf]
        %v689 = vld [vmem:[%s234 + $0x8] sm:$0xf]
        %v690 = vld [vmem:[%s234 + $0xc] sm:$0xf]
        %v691 = vld [vmem:[%s234 + $0x10] sm:$0xf]
        %v692 = vld [vmem:[%s234 + $0x14] sm:$0xf]
        %v693 = vld [vmem:[%s234 + $0x18] sm:$0xf]
        %v694 = vld [vmem:[%s234 + $0x1c] sm:$0xf]
        %v695 = vld [vmem:[%s240] sm:$0xf]
        %v696 = vld [vmem:[%s240 + $0x4] sm:$0xf]
        %v697 = vld [vmem:[%s240 + $0x8] sm:$0xf]
        %v698 = vld [vmem:[%s240 + $0xc] sm:$0xf]
        %v699 = vld [vmem:[%s240 + $0x10] sm:$0xf]
        %v700 = vld [vmem:[%s240 + $0x14] sm:$0xf]
        %v701 = vld [vmem:[%s240 + $0x18] sm:$0xf]
        %v702 = vld [vmem:[%s240 + $0x1c] sm:$0xf]
        %v704 = vunpack.c.l.b16 %v679
        %v705 = vpack.c.b16 %v704, %v704
        %706 = vrot.lane.b32.xlu0 %v705, 96
        %v707 = vpop.permute.xlu0 %706
        %v709 = vunpack.c.l.b16 %v687
        %v710 = vpack.c.b16 %v709, %v709
        %711 = vrot.lane.b32.xlu0 %v710, 96
        %v712 = vpop.permute.xlu0 %711
        %v714 = vsel %vm268, %v707, 0
        %v717 = vsel %vm268, %v712, 0
        %719 = vmatpush.bf16.xpose.msra.mxu0 0
        %720 = vmatpush.bf16.xpose.msra.mxu0 0
        %721 = vmatpush.bf16.xpose.msra.mxu0 0
        %722 = vmatpush.bf16.xpose.msra.mxu0 0
        %723 = vmatpush.bf16.xpose.msra.mxu0 0
        %724 = vmatpush.bf16.xpose.msra.mxu0 0
        %725 = vmatpush.bf16.xpose.msra.mxu0 0
        %726 = vmatpush.bf16.xpose.msra.mxu0 %v717
        %727 = vmatmul.bf16.gmra.mxu0 %v714
        %v728 = vpop.f32.mrf.mxu0
        %v729 = vadd.f32 0.0, %v728
        %v730 = vpop.f32.mrf.mxu0
        %731 = vdwg.mxu0
        %v733 = vunpack.c.l.b16 %v680
        %v734 = vpack.c.b16 %v733, %v733
        %735 = vrot.lane.b32.xlu0 %v734, 96
        %v736 = vpop.permute.xlu0 %735
        %v738 = vunpack.c.l.b16 %v688
        %v739 = vpack.c.b16 %v738, %v738
        %740 = vrot.lane.b32.xlu0 %v739, 96
        %v741 = vpop.permute.xlu0 %740
        %v743 = vsel %vm268, %v736, 0
        %v746 = vsel %vm268, %v741, 0
        %748 = vmatpush.bf16.xpose.msra.mxu0 0
        %749 = vmatpush.bf16.xpose.msra.mxu0 0
        %750 = vmatpush.bf16.xpose.msra.mxu0 0
        %751 = vmatpush.bf16.xpose.msra.mxu0 0
        %752 = vmatpush.bf16.xpose.msra.mxu0 0
        %753 = vmatpush.bf16.xpose.msra.mxu0 0
        %754 = vmatpush.bf16.xpose.msra.mxu0 0
        %755 = vmatpush.bf16.xpose.msra.mxu0 %v746
        %756 = vmatmul.bf16.gmra.mxu0 %v743
        %v757 = vpop.f32.mrf.mxu0
        %v758 = vadd.f32 0.0, %v757
        %v759 = vpop.f32.mrf.mxu0
        %760 = vdwg.mxu0
        %v762 = vunpack.c.l.b16 %v681
        %v763 = vpack.c.b16 %v762, %v762
        %764 = vrot.lane.b32.xlu0 %v763, 96
        %v765 = vpop.permute.xlu0 %764
        %v767 = vunpack.c.l.b16 %v689
        %v768 = vpack.c.b16 %v767, %v767
        %769 = vrot.lane.b32.xlu0 %v768, 96
        %v770 = vpop.permute.xlu0 %769
        %v772 = vsel %vm268, %v765, 0
        %v775 = vsel %vm268, %v770, 0
        %777 = vmatpush.bf16.xpose.msra.mxu0 0
        %778 = vmatpush.bf16.xpose.msra.mxu0 0
        %779 = vmatpush.bf16.xpose.msra.mxu0 0
        %780 = vmatpush.bf16.xpose.msra.mxu0 0
        %781 = vmatpush.bf16.xpose.msra.mxu0 0
        %782 = vmatpush.bf16.xpose.msra.mxu0 0
        %783 = vmatpush.bf16.xpose.msra.mxu0 0
        %784 = vmatpush.bf16.xpose.msra.mxu0 %v775
        %785 = vmatmul.bf16.gmra.mxu0 %v772
        %v786 = vpop.f32.mrf.mxu0
        %v787 = vadd.f32 0.0, %v786
        %v788 = vpop.f32.mrf.mxu0
        %789 = vdwg.mxu0
        %v791 = vunpack.c.l.b16 %v682
        %v792 = vpack.c.b16 %v791, %v791
        %793 = vrot.lane.b32.xlu0 %v792, 96
        %v794 = vpop.permute.xlu0 %793
        %v796 = vunpack.c.l.b16 %v690
        %v797 = vpack.c.b16 %v796, %v796
        %798 = vrot.lane.b32.xlu0 %v797, 96
        %v799 = vpop.permute.xlu0 %798
        %v801 = vsel %vm268, %v794, 0
        %v804 = vsel %vm268, %v799, 0
        %806 = vmatpush.bf16.xpose.msra.mxu0 0
        %807 = vmatpush.bf16.xpose.msra.mxu0 0
        %808 = vmatpush.bf16.xpose.msra.mxu0 0
        %809 = vmatpush.bf16.xpose.msra.mxu0 0
        %810 = vmatpush.bf16.xpose.msra.mxu0 0
        %811 = vmatpush.bf16.xpose.msra.mxu0 0
        %812 = vmatpush.bf16.xpose.msra.mxu0 0
        %813 = vmatpush.bf16.xpose.msra.mxu0 %v804
        %814 = vmatmul.bf16.gmra.mxu0 %v801
        %v815 = vpop.f32.mrf.mxu0
        %v816 = vadd.f32 0.0, %v815
        %v817 = vpop.f32.mrf.mxu0
        %818 = vdwg.mxu0
        %v820 = vunpack.c.l.b16 %v683
        %v821 = vpack.c.b16 %v820, %v820
        %822 = vrot.lane.b32.xlu0 %v821, 96
        %v823 = vpop.permute.xlu0 %822
        %v825 = vunpack.c.l.b16 %v691
        %v826 = vpack.c.b16 %v825, %v825
        %827 = vrot.lane.b32.xlu0 %v826, 96
        %v828 = vpop.permute.xlu0 %827
        %v830 = vsel %vm268, %v823, 0
        %v833 = vsel %vm268, %v828, 0
        %835 = vmatpush.bf16.xpose.msra.mxu0 0
        %836 = vmatpush.bf16.xpose.msra.mxu0 0
        %837 = vmatpush.bf16.xpose.msra.mxu0 0
        %838 = vmatpush.bf16.xpose.msra.mxu0 0
        %839 = vmatpush.bf16.xpose.msra.mxu0 0
        %840 = vmatpush.bf16.xpose.msra.mxu0 0
        %841 = vmatpush.bf16.xpose.msra.mxu0 0
        %842 = vmatpush.bf16.xpose.msra.mxu0 %v833
        %843 = vmatmul.bf16.gmra.mxu0 %v830
        %v844 = vpop.f32.mrf.mxu0
        %v845 = vadd.f32 0.0, %v844
        %v846 = vpop.f32.mrf.mxu0
        %847 = vdwg.mxu0
        %v849 = vunpack.c.l.b16 %v684
        %v850 = vpack.c.b16 %v849, %v849
        %851 = vrot.lane.b32.xlu0 %v850, 96
        %v852 = vpop.permute.xlu0 %851
        %v854 = vunpack.c.l.b16 %v692
        %v855 = vpack.c.b16 %v854, %v854
        %856 = vrot.lane.b32.xlu0 %v855, 96
        %v857 = vpop.permute.xlu0 %856
        %v859 = vsel %vm268, %v852, 0
        %v862 = vsel %vm268, %v857, 0
        %864 = vmatpush.bf16.xpose.msra.mxu0 0
        %865 = vmatpush.bf16.xpose.msra.mxu0 0
        %866 = vmatpush.bf16.xpose.msra.mxu0 0
        %867 = vmatpush.bf16.xpose.msra.mxu0 0
        %868 = vmatpush.bf16.xpose.msra.mxu0 0
        %869 = vmatpush.bf16.xpose.msra.mxu0 0
        %870 = vmatpush.bf16.xpose.msra.mxu0 0
        %871 = vmatpush.bf16.xpose.msra.mxu0 %v862
        %872 = vmatmul.bf16.gmra.mxu0 %v859
        %v873 = vpop.f32.mrf.mxu0
        %v874 = vadd.f32 0.0, %v873
        %v875 = vpop.f32.mrf.mxu0
        %876 = vdwg.mxu0
        %v878 = vunpack.c.l.b16 %v685
        %v879 = vpack.c.b16 %v878, %v878
        %880 = vrot.lane.b32.xlu0 %v879, 96
        %v881 = vpop.permute.xlu0 %880
        %v883 = vunpack.c.l.b16 %v693
        %v884 = vpack.c.b16 %v883, %v883
        %885 = vrot.lane.b32.xlu0 %v884, 96
        %v886 = vpop.permute.xlu0 %885
        %v888 = vsel %vm268, %v881, 0
        %v891 = vsel %vm268, %v886, 0
        %893 = vmatpush.bf16.xpose.msra.mxu0 0
        %894 = vmatpush.bf16.xpose.msra.mxu0 0
        %895 = vmatpush.bf16.xpose.msra.mxu0 0
        %896 = vmatpush.bf16.xpose.msra.mxu0 0
        %897 = vmatpush.bf16.xpose.msra.mxu0 0
        %898 = vmatpush.bf16.xpose.msra.mxu0 0
        %899 = vmatpush.bf16.xpose.msra.mxu0 0
        %900 = vmatpush.bf16.xpose.msra.mxu0 %v891
        %901 = vmatmul.bf16.gmra.mxu0 %v888
        %v902 = vpop.f32.mrf.mxu0
        %v903 = vadd.f32 0.0, %v902
        %v904 = vpop.f32.mrf.mxu0
        %905 = vdwg.mxu0
        %v907 = vunpack.c.l.b16 %v686
        %v908 = vpack.c.b16 %v907, %v907
        %909 = vrot.lane.b32.xlu0 %v908, 96
        %v910 = vpop.permute.xlu0 %909
        %v912 = vunpack.c.l.b16 %v694
        %v913 = vpack.c.b16 %v912, %v912
        %914 = vrot.lane.b32.xlu0 %v913, 96
        %v915 = vpop.permute.xlu0 %914
        %v917 = vsel %vm268, %v910, 0
        %v920 = vsel %vm268, %v915, 0
        %922 = vmatpush.bf16.xpose.msra.mxu0 0
        %923 = vmatpush.bf16.xpose.msra.mxu0 0
        %924 = vmatpush.bf16.xpose.msra.mxu0 0
        %925 = vmatpush.bf16.xpose.msra.mxu0 0
        %926 = vmatpush.bf16.xpose.msra.mxu0 0
        %927 = vmatpush.bf16.xpose.msra.mxu0 0
        %928 = vmatpush.bf16.xpose.msra.mxu0 0
        %929 = vmatpush.bf16.xpose.msra.mxu0 %v920
        %930 = vmatmul.bf16.gmra.mxu0 %v917
        %v931 = vpop.f32.mrf.mxu0
        %v932 = vadd.f32 0.0, %v931
        %v933 = vpop.f32.mrf.mxu0
        %934 = vdwg.mxu0
        %v935 = vsel %vm421, %v729, -inf
        %936 = vmax.xlane.f32.xlu0 %v935
        %v937 = vpop.xlane.xlu0 %936
        %v938 = vsel %vm421, %v758, -inf
        %939 = vmax.xlane.f32.xlu0 %v938
        %v940 = vpop.xlane.xlu0 %939
        %v941 = vsel %vm421, %v787, -inf
        %942 = vmax.xlane.f32.xlu0 %v941
        %v943 = vpop.xlane.xlu0 %942
        %v944 = vsel %vm421, %v816, -inf
        %945 = vmax.xlane.f32.xlu0 %v944
        %v946 = vpop.xlane.xlu0 %945
        %v947 = vsel %vm421, %v845, -inf
        %948 = vmax.xlane.f32.xlu0 %v947
        %v949 = vpop.xlane.xlu0 %948
        %v950 = vsel %vm421, %v874, -inf
        %951 = vmax.xlane.f32.xlu0 %v950
        %v952 = vpop.xlane.xlu0 %951
        %v953 = vsel %vm421, %v903, -inf
        %954 = vmax.xlane.f32.xlu0 %v953
        %v955 = vpop.xlane.xlu0 %954
        %v956 = vsel %vm421, %v932, -inf
        %957 = vmax.xlane.f32.xlu0 %v956
        %v958 = vpop.xlane.xlu0 %957
        %v959 = vsub.f32 %v729, %v937
        %v960 = vsub.f32 %v758, %v940
        %v961 = vsub.f32 %v787, %v943
        %v962 = vsub.f32 %v816, %v946
        %v963 = vsub.f32 %v845, %v949
        %v964 = vsub.f32 %v874, %v952
        %v965 = vsub.f32 %v903, %v955
        %v966 = vsub.f32 %v932, %v958
        %v967 = vmul.f32 %v959, 1.442695
        %v968 = vpow.pop %v967
        %v969 = vmul.f32 %v960, 1.442695
        %v970 = vpow.pop %v969
        %v971 = vmul.f32 %v961, 1.442695
        %v972 = vpow.pop %v971
        %v973 = vmul.f32 %v962, 1.442695
        %v974 = vpow.pop %v973
        %v975 = vmul.f32 %v963, 1.442695
        %v976 = vpow.pop %v975
        %v977 = vmul.f32 %v964, 1.442695
        %v978 = vpow.pop %v977
        %v979 = vmul.f32 %v965, 1.442695
        %v980 = vpow.pop %v979
        %v981 = vmul.f32 %v966, 1.442695
        %v982 = vpow.pop %v981
        %v983 = vsel %vm421, %v968, 0.0
        %984 = vadd.xlane.f32.xlu0 %v983
        %v985 = vpop.xlane.xlu0 %984
        %v986 = vsel %vm421, %v970, 0.0
        %987 = vadd.xlane.f32.xlu0 %v986
        %v988 = vpop.xlane.xlu0 %987
        %v989 = vsel %vm421, %v972, 0.0
        %990 = vadd.xlane.f32.xlu0 %v989
        %v991 = vpop.xlane.xlu0 %990
        %v992 = vsel %vm421, %v974, 0.0
        %993 = vadd.xlane.f32.xlu0 %v992
        %v994 = vpop.xlane.xlu0 %993
        %v995 = vsel %vm421, %v976, 0.0
        %996 = vadd.xlane.f32.xlu0 %v995
        %v997 = vpop.xlane.xlu0 %996
        %v998 = vsel %vm421, %v978, 0.0
        %999 = vadd.xlane.f32.xlu0 %v998
        %v1000 = vpop.xlane.xlu0 %999
        %v1001 = vsel %vm421, %v980, 0.0
        %1002 = vadd.xlane.f32.xlu0 %v1001
        %v1003 = vpop.xlane.xlu0 %1002
        %v1004 = vsel %vm421, %v982, 0.0
        %1005 = vadd.xlane.f32.xlu0 %v1004
        %v1006 = vpop.xlane.xlu0 %1005
        %v1007 = vrcp.pop %v985
        %v1008 = vrcp.pop %v988
        %v1009 = vrcp.pop %v991
        %v1010 = vrcp.pop %v994
        %v1011 = vrcp.pop %v997
        %v1012 = vrcp.pop %v1000
        %v1013 = vrcp.pop %v1003
        %v1014 = vrcp.pop %v1006
        %v1015 = vmul.f32 %v968, %v1007
        %v1016 = vmul.f32 %v970, %v1008
        %v1017 = vmul.f32 %v972, %v1009
        %v1018 = vmul.f32 %v974, %v1010
        %v1019 = vmul.f32 %v976, %v1011
        %v1020 = vmul.f32 %v978, %v1012
        %v1021 = vmul.f32 %v980, %v1013
        %v1022 = vmul.f32 %v982, %v1014
        %v1023 = vpack.c.bf16 %v1015, %v1015
        %v1024 = vpack.c.bf16 %v1016, %v1016
        %v1025 = vpack.c.bf16 %v1017, %v1017
        %v1026 = vpack.c.bf16 %v1018, %v1018
        %v1027 = vpack.c.bf16 %v1019, %v1019
        %v1028 = vpack.c.bf16 %v1020, %v1020
        %v1029 = vpack.c.bf16 %v1021, %v1021
        %v1030 = vpack.c.bf16 %v1022, %v1022
        %v1032 = vunpack.c.l.b16 %v695
        %v1033 = vpack.c.b16 %v1032, %v1032
        %1034 = vrot.lane.b32.xlu0 %v1033, 96
        %v1035 = vpop.permute.xlu0 %1034
        %v1037 = vsel %vm421, %v1023, 0
        %v1040 = vsel %vm521, %v1035, 0
        %1042 = vmatpush.bf16.msra.mxu0 0
        %1043 = vmatpush.bf16.msra.mxu0 0
        %1044 = vmatpush.bf16.msra.mxu0 0
        %1045 = vmatpush.bf16.msra.mxu0 0
        %1046 = vmatpush.bf16.msra.mxu0 0
        %1047 = vmatpush.bf16.msra.mxu0 0
        %1048 = vmatpush.bf16.msra.mxu0 0
        %1049 = vmatpush.bf16.msra.mxu0 %v1040
        %1050 = vmatmul.bf16.gmra.mxu0 %v1037
        %v1051 = vpop.f32.mrf.mxu0
        %v1052 = vadd.f32 0.0, %v1051
        %v1053 = vpop.f32.mrf.mxu0
        %1054 = vdwg.mxu0
        %v1056 = vunpack.c.l.b16 %v696
        %v1057 = vpack.c.b16 %v1056, %v1056
        %1058 = vrot.lane.b32.xlu0 %v1057, 96
        %v1059 = vpop.permute.xlu0 %1058
        %v1061 = vsel %vm421, %v1024, 0
        %v1064 = vsel %vm521, %v1059, 0
        %1066 = vmatpush.bf16.msra.mxu0 0
        %1067 = vmatpush.bf16.msra.mxu0 0
        %1068 = vmatpush.bf16.msra.mxu0 0
        %1069 = vmatpush.bf16.msra.mxu0 0
        %1070 = vmatpush.bf16.msra.mxu0 0
        %1071 = vmatpush.bf16.msra.mxu0 0
        %1072 = vmatpush.bf16.msra.mxu0 0
        %1073 = vmatpush.bf16.msra.mxu0 %v1064
        %1074 = vmatmul.bf16.gmra.mxu0 %v1061
        %v1075 = vpop.f32.mrf.mxu0
        %v1076 = vadd.f32 0.0, %v1075
        %v1077 = vpop.f32.mrf.mxu0
        %1078 = vdwg.mxu0
        %v1080 = vunpack.c.l.b16 %v697
        %v1081 = vpack.c.b16 %v1080, %v1080
        %1082 = vrot.lane.b32.xlu0 %v1081, 96
        %v1083 = vpop.permute.xlu0 %1082
        %v1085 = vsel %vm421, %v1025, 0
        %v1088 = vsel %vm521, %v1083, 0
        %1090 = vmatpush.bf16.msra.mxu0 0
        %1091 = vmatpush.bf16.msra.mxu0 0
        %1092 = vmatpush.bf16.msra.mxu0 0
        %1093 = vmatpush.bf16.msra.mxu0 0
        %1094 = vmatpush.bf16.msra.mxu0 0
        %1095 = vmatpush.bf16.msra.mxu0 0
        %1096 = vmatpush.bf16.msra.mxu0 0
        %1097 = vmatpush.bf16.msra.mxu0 %v1088
        %1098 = vmatmul.bf16.gmra.mxu0 %v1085
        %v1099 = vpop.f32.mrf.mxu0
        %v1100 = vadd.f32 0.0, %v1099
        %v1101 = vpop.f32.mrf.mxu0
        %1102 = vdwg.mxu0
        %v1104 = vunpack.c.l.b16 %v698
        %v1105 = vpack.c.b16 %v1104, %v1104
        %1106 = vrot.lane.b32.xlu0 %v1105, 96
        %v1107 = vpop.permute.xlu0 %1106
        %v1109 = vsel %vm421, %v1026, 0
        %v1112 = vsel %vm521, %v1107, 0
        %1114 = vmatpush.bf16.msra.mxu0 0
        %1115 = vmatpush.bf16.msra.mxu0 0
        %1116 = vmatpush.bf16.msra.mxu0 0
        %1117 = vmatpush.bf16.msra.mxu0 0
        %1118 = vmatpush.bf16.msra.mxu0 0
        %1119 = vmatpush.bf16.msra.mxu0 0
        %1120 = vmatpush.bf16.msra.mxu0 0
        %1121 = vmatpush.bf16.msra.mxu0 %v1112
        %1122 = vmatmul.bf16.gmra.mxu0 %v1109
        %v1123 = vpop.f32.mrf.mxu0
        %v1124 = vadd.f32 0.0, %v1123
        %v1125 = vpop.f32.mrf.mxu0
        %1126 = vdwg.mxu0
        %v1128 = vunpack.c.l.b16 %v699
        %v1129 = vpack.c.b16 %v1128, %v1128
        %1130 = vrot.lane.b32.xlu0 %v1129, 96
        %v1131 = vpop.permute.xlu0 %1130
        %v1133 = vsel %vm421, %v1027, 0
        %v1136 = vsel %vm521, %v1131, 0
        %1138 = vmatpush.bf16.msra.mxu0 0
        %1139 = vmatpush.bf16.msra.mxu0 0
        %1140 = vmatpush.bf16.msra.mxu0 0
        %1141 = vmatpush.bf16.msra.mxu0 0
        %1142 = vmatpush.bf16.msra.mxu0 0
        %1143 = vmatpush.bf16.msra.mxu0 0
        %1144 = vmatpush.bf16.msra.mxu0 0
        %1145 = vmatpush.bf16.msra.mxu0 %v1136
        %1146 = vmatmul.bf16.gmra.mxu0 %v1133
        %v1147 = vpop.f32.mrf.mxu0
        %v1148 = vadd.f32 0.0, %v1147
        %v1149 = vpop.f32.mrf.mxu0
        %1150 = vdwg.mxu0
        %v1152 = vunpack.c.l.b16 %v700
        %v1153 = vpack.c.b16 %v1152, %v1152
        %1154 = vrot.lane.b32.xlu0 %v1153, 96
        %v1155 = vpop.permute.xlu0 %1154
        %v1157 = vsel %vm421, %v1028, 0
        %v1160 = vsel %vm521, %v1155, 0
        %1162 = vmatpush.bf16.msra.mxu0 0
        %1163 = vmatpush.bf16.msra.mxu0 0
        %1164 = vmatpush.bf16.msra.mxu0 0
        %1165 = vmatpush.bf16.msra.mxu0 0
        %1166 = vmatpush.bf16.msra.mxu0 0
        %1167 = vmatpush.bf16.msra.mxu0 0
        %1168 = vmatpush.bf16.msra.mxu0 0
        %1169 = vmatpush.bf16.msra.mxu0 %v1160
        %1170 = vmatmul.bf16.gmra.mxu0 %v1157
        %v1171 = vpop.f32.mrf.mxu0
        %v1172 = vadd.f32 0.0, %v1171
        %v1173 = vpop.f32.mrf.mxu0
        %1174 = vdwg.mxu0
        %v1176 = vunpack.c.l.b16 %v701
        %v1177 = vpack.c.b16 %v1176, %v1176
        %1178 = vrot.lane.b32.xlu0 %v1177, 96
        %v1179 = vpop.permute.xlu0 %1178
        %v1181 = vsel %vm421, %v1029, 0
        %v1184 = vsel %vm521, %v1179, 0
        %1186 = vmatpush.bf16.msra.mxu0 0
        %1187 = vmatpush.bf16.msra.mxu0 0
        %1188 = vmatpush.bf16.msra.mxu0 0
        %1189 = vmatpush.bf16.msra.mxu0 0
        %1190 = vmatpush.bf16.msra.mxu0 0
        %1191 = vmatpush.bf16.msra.mxu0 0
        %1192 = vmatpush.bf16.msra.mxu0 0
        %1193 = vmatpush.bf16.msra.mxu0 %v1184
        %1194 = vmatmul.bf16.gmra.mxu0 %v1181
        %v1195 = vpop.f32.mrf.mxu0
        %v1196 = vadd.f32 0.0, %v1195
        %v1197 = vpop.f32.mrf.mxu0
        %1198 = vdwg.mxu0
        %v1200 = vunpack.c.l.b16 %v702
        %v1201 = vpack.c.b16 %v1200, %v1200
        %1202 = vrot.lane.b32.xlu0 %v1201, 96
        %v1203 = vpop.permute.xlu0 %1202
        %v1205 = vsel %vm421, %v1030, 0
        %v1208 = vsel %vm521, %v1203, 0
        %1210 = vmatpush.bf16.msra.mxu0 0
        %1211 = vmatpush.bf16.msra.mxu0 0
        %1212 = vmatpush.bf16.msra.mxu0 0
        %1213 = vmatpush.bf16.msra.mxu0 0
        %1214 = vmatpush.bf16.msra.mxu0 0
        %1215 = vmatpush.bf16.msra.mxu0 0
        %1216 = vmatpush.bf16.msra.mxu0 0
        %1217 = vmatpush.bf16.msra.mxu0 %v1208
        %1218 = vmatmul.bf16.gmra.mxu0 %v1205
        %v1219 = vpop.f32.mrf.mxu0
        %v1220 = vadd.f32 0.0, %v1219
        %v1221 = vpop.f32.mrf.mxu0
        %1222 = vdwg.mxu0
        %v1223 = vpack.c.bf16 %v1052, %v1052
        %v1224 = vpack.c.bf16 %v1076, %v1076
        %v1225 = vpack.c.bf16 %v1100, %v1100
        %v1226 = vpack.c.bf16 %v1124, %v1124
        %v1227 = vpack.c.bf16 %v1148, %v1148
        %v1228 = vpack.c.bf16 %v1172, %v1172
        %v1229 = vpack.c.bf16 %v1196, %v1196
        %v1230 = vpack.c.bf16 %v1220, %v1220
        %v1239 = vunpack.c.l.b16 %v1223
        %v1240 = vunpack.c.l.b16 %v1224
        %v1241 = vunpack.c.l.b16 %v1225
        %v1242 = vunpack.c.l.b16 %v1226
        %v1243 = vunpack.c.l.b16 %v1227
        %v1244 = vunpack.c.l.b16 %v1228
        %v1245 = vunpack.c.l.b16 %v1229
        %v1246 = vunpack.c.l.b16 %v1230
        %v1247 = vpack.c.b16 %v1239, %v1239
        %v1248 = vpack.c.b16 %v1240, %v1240
        %v1249 = vpack.c.b16 %v1241, %v1241
        %v1250 = vpack.c.b16 %v1242, %v1242
        %v1251 = vpack.c.b16 %v1243, %v1243
        %v1252 = vpack.c.b16 %v1244, %v1244
        %v1253 = vpack.c.b16 %v1245, %v1245
        %v1254 = vpack.c.b16 %v1246, %v1246
        %1255 = vrot.lane.b32.xlu0 %v1247, 32
        %v1256 = vpop.permute.xlu0 %1255
        %1257 = vrot.lane.b32.xlu0 %v1248, 32
        %v1258 = vpop.permute.xlu0 %1257
        %1259 = vrot.lane.b32.xlu0 %v1249, 32
        %v1260 = vpop.permute.xlu0 %1259
        %1261 = vrot.lane.b32.xlu0 %v1250, 32
        %v1262 = vpop.permute.xlu0 %1261
        %1263 = vrot.lane.b32.xlu0 %v1251, 32
        %v1264 = vpop.permute.xlu0 %1263
        %1265 = vrot.lane.b32.xlu0 %v1252, 32
        %v1266 = vpop.permute.xlu0 %1265
        %1267 = vrot.lane.b32.xlu0 %v1253, 32
        %v1268 = vpop.permute.xlu0 %1267
        %1269 = vrot.lane.b32.xlu0 %v1254, 32
        %v1270 = vpop.permute.xlu0 %1269
        %v1273 = vsel %vm268, %v671, %v1256
        %v1276 = vsel %vm268, %v672, %v1258
        %v1279 = vsel %vm268, %v673, %v1260
        %v1282 = vsel %vm268, %v674, %v1262
        %v1285 = vsel %vm268, %v675, %v1264
        %v1288 = vsel %vm268, %v676, %v1266
        %v1291 = vsel %vm268, %v677, %v1268
        %v1294 = vsel %vm268, %v678, %v1270
        %v1295 = vld [vmem:[%s3] sm:$0xf]
        %v1296 = vld [vmem:[%s3 + $0x4] sm:$0xf]
        %v1297 = vld [vmem:[%s3 + $0x8] sm:$0xf]
        %v1298 = vld [vmem:[%s3 + $0xc] sm:$0xf]
        %v1299 = vld [vmem:[%s3 + $0x10] sm:$0xf]
        %v1300 = vld [vmem:[%s3 + $0x14] sm:$0xf]
        %v1301 = vld [vmem:[%s3 + $0x18] sm:$0xf]
        %v1302 = vld [vmem:[%s3 + $0x1c] sm:$0xf]
        %v1311 = vunpack.c.l.b16 %v1273
        %v1312 = vunpack.c.l.b16 %v1276
        %v1313 = vunpack.c.l.b16 %v1279
        %v1314 = vunpack.c.l.b16 %v1282
        %v1315 = vunpack.c.l.b16 %v1285
        %v1316 = vunpack.c.l.b16 %v1288
        %v1317 = vunpack.c.l.b16 %v1291
        %v1318 = vunpack.c.l.b16 %v1294
        %v1319 = vpack.c.b16 %v1312, %v1311
        %v1320 = vpack.c.b16 %v1314, %v1313
        %v1321 = vpack.c.b16 %v1316, %v1315
        %v1322 = vpack.c.b16 %v1318, %v1317
        %v1331 = vunpack.c.l.b16 %v1295
        %v1332 = vunpack.c.l.b16 %v1296
        %v1333 = vunpack.c.l.b16 %v1297
        %v1334 = vunpack.c.l.b16 %v1298
        %v1335 = vunpack.c.l.b16 %v1299
        %v1336 = vunpack.c.l.b16 %v1300
        %v1337 = vunpack.c.l.b16 %v1301
        %v1338 = vunpack.c.l.b16 %v1302
        %v1339 = vpack.c.b16 %v1332, %v1331
        %v1340 = vpack.c.b16 %v1334, %v1333
        %v1341 = vpack.c.b16 %v1336, %v1335
        %v1342 = vpack.c.b16 %v1338, %v1337
        %vm1347 = vcmask 523264
        %v1349 = vsel %vm1347, %v1319, 0
        %v1352 = vsel %vm1347, %v1320, 0
        %v1355 = vsel %vm1347, %v1321, 0
        %v1358 = vsel %vm1347, %v1322, 0
        %1360 = vmatpush.bf16.msra.mxu0 0
        %1361 = vmatpush.bf16.msra.mxu0 0
        %1362 = vmatpush.bf16.msra.mxu0 0
        %1363 = vmatpush.bf16.msra.mxu0 0
        %1364 = vmatpush.bf16.msra.mxu0 %v1342
        %1365 = vmatpush.bf16.msra.mxu0 %v1341
        %1366 = vmatpush.bf16.msra.mxu0 %v1340
        %1367 = vmatpush.bf16.msra.mxu0 %v1339
        %1368 = vmatmul.bf16.gmra.mxu0 %v1349
        %v1369 = vpop.f32.mrf.mxu0
        %v1370 = vadd.f32 0.0, %v1369
        %v1371 = vpop.f32.mrf.mxu0
        %v1372 = vadd.f32 0.0, %v1371
        %1373 = vmatmul.bf16.gmra.mxu0 %v1352
        %v1374 = vpop.f32.mrf.mxu0
        %v1375 = vadd.f32 0.0, %v1374
        %v1376 = vpop.f32.mrf.mxu0
        %v1377 = vadd.f32 0.0, %v1376
        %1378 = vmatmul.bf16.gmra.mxu0 %v1355
        %v1379 = vpop.f32.mrf.mxu0
        %v1380 = vadd.f32 0.0, %v1379
        %v1381 = vpop.f32.mrf.mxu0
        %v1382 = vadd.f32 0.0, %v1381
        %1383 = vmatmul.bf16.gmra.mxu0 %v1358
        %v1384 = vpop.f32.mrf.mxu0
        %v1385 = vadd.f32 0.0, %v1384
        %v1386 = vpop.f32.mrf.mxu0
        %v1387 = vadd.f32 0.0, %v1386
        %1388 = vdwg.mxu0
        %1389 = vst [vmem:[%s223] sm:$0xff] %v1370
        %1390 = vst [vmem:[%s223 + $0x8] sm:$0xff] %v1372
        %1391 = vst [vmem:[%s223 + $0x10] sm:$0xff] %v1375
        %1392 = vst [vmem:[%s223 + $0x18] sm:$0xff] %v1377
        %1393 = vst [vmem:[%s223 + $0x20] sm:$0xff] %v1380
        %1394 = vst [vmem:[%s223 + $0x28] sm:$0xff] %v1382
        %1395 = vst [vmem:[%s223 + $0x30] sm:$0xff] %v1385
        %1396 = vst [vmem:[%s223 + $0x38] sm:$0xff] %v1387
        %s1397 = sand.u32 %s125, 1
        %s1398 = scalar_lea.sflag [#allocation3], %s1397
        %s1399 = sand.u32 %s125, 1
        %s1400 = smul.addr %s1399, 64
        %s1401 = scalar_lea.vmem [#allocation2], %s1400
        // Predicated region
        $region37: #{multihead_cross_attention_forward.1} parent=35 // pred_check
          %p1402 = pneg %p135
        $region38: #{multihead_cross_attention_forward.1} parent=35 // pred_check_branch
          %1404 = sbr.rel (%p1402) target = $region40
        $region39: #{multihead_cross_attention_forward.1} parent=35 // pred_region
          %s1405 = smul.u32 8, %s18
          %1407 = vsyncadd %s1398, 0
          %s1408 = smul.addr %s1405, 8
          %s1409 = scalar_lea.hbm %s4, %s1408
          %s1410 = sshll.u32 %s1401, 4
          %s1411 = int_to_ptr.vmem [resolvable:$true] %s1410
          %s1412 = sshll.u32 %s1409, 4
          %s1413 = int_to_ptr.hbm [resolvable:$true] %s1412
          %1418 = dma.vmem_to_hbm [thread:$0]  %s1411, 1024, %s1413, %s1398, 128, 128, 8
        $region40: #{multihead_cross_attention_forward.1} parent=35 // pred_fallthru
          _
      $region36: #{multihead_cross_attention_forward.1} parent=5 // pred_fallthru
        _
      %p1419 = scmp.le.s32.totalorder 2, %s13
      // Predicated region
      $region41: #{multihead_cross_attention_forward.1} parent=5 // pred_check
        %p1420 = pneg %p1419
      $region42: #{multihead_cross_attention_forward.1} parent=5 // pred_check_branch
        %1422 = sbr.rel (%p1420) target = $region44
      $region43: #{multihead_cross_attention_forward.1} parent=5 // pred_region
        %s1423 = ssub.s32 %s13, 2
        // Predicated region
        $region45: #{multihead_cross_attention_forward.1} parent=43 // pred_check
          %p1424 = pneg %p141
        $region46: #{multihead_cross_attention_forward.1} parent=43 // pred_check_branch
          %1426 = sbr.rel (%p1424) target = $region48
        $region47: #{multihead_cross_attention_forward.1} parent=43 // pred_region
          %s1427 = sand.u32 %s126, 1
          %s1428 = scalar_lea.sflag [#allocation3], %s1427
          %s1429 = sand.u32 %s126, 1
          %s1430 = smul.addr %s1429, 64
          %s1431 = scalar_lea.vmem [#allocation2], %s1430
          %1433 = dma.done %s1428, 1024
        $region48: #{multihead_cross_attention_forward.1} parent=43 // pred_fallthru
          _
      $region44: #{multihead_cross_attention_forward.1} parent=5 // pred_fallthru
        _
    $region6: #{multihead_cross_attention_forward.1} parent=1 // loop_footer
      %s17 = sadd.s32 1, %s13
    $region7: #{multihead_cross_attention_forward.1} parent=1 // loop_footer_branch
      %12 = sbr.rel target = $region3
    $region8: #{multihead_cross_attention_forward.1} parent=1 // loop_exit
      _
    %1434 = vsyncpa [#allocation3], 1
    %s1435 = scalar_lea.sflag [#allocation3], 1
    %1436 = vsyncpa %s1435, 1

</llo_original>
